<compile_context>
chip_gen: v5e
topology: v5e:2x2
jax: 0.10.0
libtpu: 0.0.40
codegen_flags: <defaults>
</compile_context>

<pallas_src>
import functools
import math

import jax
import jax.numpy as jnp
from jax import lax
from jax.experimental import pallas as pl
from jax.experimental.pallas import tpu as pltpu

# ---------------- module hyper-parameters (deterministic, from __init__) ----
FIRST_FREQ = 1
LAST_FREQ = 8
FILTER_N = LAST_FREQ - FIRST_FREQ + 1        # 8  (must equal a_.shape[0])
KERNEL_SIZE = 11                             # odd -> "same" length output
OMEGA = 5.15
PAD = (KERNEL_SIZE - 1) // 2


def _make_a_param():
    # nn.Parameter(torch.tensor([x/100 for x in range(first, last+1)]).view(-1,1))
    vals = jnp.array([float(x) / 100.0 for x in range(FIRST_FREQ, LAST_FREQ + 1)],
                     dtype=jnp.float32)
    return vals.reshape(-1, 1)               # [F, 1]


def _morlet_filters(a_param):
    """[F,1] centre-frequency parameter -> [F,K] Morlet filter bank (f32).

    Exactly mirrors the torch forward's filter construction; computed once per
    call in plain JAX (it is 8x11 -- negligible) instead of per grid step.
    """
    a = jnp.maximum(a_param.astype(jnp.float32), 1e-07)           # clamp(min=1e-7)
    s = 2.5 * OMEGA / (a * 2.0 * math.pi)                         # [F,1]
    t = jnp.arange(KERNEL_SIZE, dtype=jnp.float32) - (KERNEL_SIZE - 1.0) / 2.0
    xs = t[None, :] / s                                           # [F,K]
    wavelet = jnp.cos(OMEGA * xs) * jnp.exp(-0.5 * xs * xs) * (math.pi ** (-0.25))
    return jnp.sqrt(1.0 / s) * wavelet                            # [F,K]


def _cwconv_kernel(w_ref, x_ref, o_ref, xpad_ref, *, tb, length, l_out):
    """One batch block per grid step.

    w_ref   : [F, K]            Morlet filter bank (replicated, tiny)
    x_ref   : [TB, 1, L]        unpadded waveforms for this batch block
    o_ref   : [TB, F, L_out]    conv output block
    xpad_ref: [TB, L + 2*PAD]   VMEM scratch with zero halos
    """
    f, k_sz = w_ref.shape

    # ---- stage the block into the zero-halo scratch (replaces external pad) ----
    halo = jnp.zeros((tb, PAD), dtype=xpad_ref.dtype)
    xpad_ref[:, :PAD] = halo
    xpad_ref[:, PAD + length:] = halo
    xpad_ref[:, PAD:PAD + length] = x_ref[:, 0, :].astype(xpad_ref.dtype)

    # ---- hoist: lane-broadcast each filter tap once per grid step ----
    w_cols = [jnp.broadcast_to(w_ref[:, k:k + 1], (f, l_out)) for k in range(k_sz)]

    # ---- hot loop: per batch row, K shifted VPU multiply-adds over [F, L_out] ----
    def body(b, carry):
        row = xpad_ref[pl.ds(b, 1), :]                            # [1, L_pad]
        xb = jnp.broadcast_to(row, (f, length + 2 * PAD))         # [F, L_pad] (once)
        acc = w_cols[0] * xb[:, 0:l_out]
        for k in range(1, k_sz):                                  # K=11, static unroll
            acc = acc + w_cols[k] * xb[:, k:k + l_out]
        o_ref[b] = acc.astype(o_ref.dtype)                        # lane-dense [F,L_out]
        return carry

    lax.fori_loop(0, tb, body, 0)


def _pick_tb(batch, length, l_out, l_pad, vmem_budget=20 << 20):
    """Batch-block size: fill a conservative VMEM budget, keep >=2 grid steps."""
    # double-buffered in/out blocks + padded scratch, per batch row (f32)
    per_row = 4 * (2 * length + 2 * FILTER_N * l_out + l_pad)
    tb = max(1, min(batch, 256, vmem_budget // max(per_row, 1)))
    if batch >= 2:
        tb = max(1, min(tb, batch // 2))      # >=2 grid steps (v7x has 2 TCs)
    while batch % tb:                         # keep blocks exact (no ragged batch)
        tb -= 1
    return tb


def cwconv_forward(waveforms, a_param):
    """waveforms: [B, 1, L] float32  ->  [B, F, L_out] float32 ('same' padding)."""
    batch, chans, length = waveforms.shape
    assert chans == 1, "only one input channel supported"
    l_out = length + 2 * PAD - KERNEL_SIZE + 1        # == length (odd kernel)
    l_pad = length + 2 * PAD

    w = _morlet_filters(a_param)                      # [F, K], built once

    tb = _pick_tb(batch, length, l_out, l_pad)
    grid = (batch // tb,)

    need = 4 * (2 * tb * length + 2 * tb * FILTER_N * l_out + tb * l_pad
                + KERNEL_SIZE * FILTER_N * l_out) + (4 << 20)
    vmem_limit = int(min(max(need, 32 << 20), 64 << 20))

    kernel = functools.partial(_cwconv_kernel, tb=tb, length=length, l_out=l_out)

    return pl.pallas_call(
        kernel,
        out_shape=jax.ShapeDtypeStruct((batch, FILTER_N, l_out), waveforms.dtype),
        grid=grid,
        in_specs=[
            pl.BlockSpec((FILTER_N, KERNEL_SIZE), lambda i: (0, 0)),   # filters (replicated)
            pl.BlockSpec((tb, 1, length), lambda i: (i, 0, 0)),        # unpadded waveforms
        ],
        out_specs=pl.BlockSpec((tb, FILTER_N, l_out), lambda i: (i, 0, 0)),
        scratch_shapes=[pltpu.VMEM((tb, l_pad), jnp.float32)],
        compiler_params=pltpu.CompilerParams(
            dimension_semantics=("parallel",),
            vmem_limit_bytes=vmem_limit),
    )(w, waveforms)


def _reference(waveforms, a_param):
    """Pure-JAX reference matching the PyTorch forward."""
    filt = _morlet_filters(a_param).reshape(FILTER_N, 1, KERNEL_SIZE)   # [O, I, K]
    return lax.conv_general_dilated(
        waveforms, filt, window_strides=(1,), padding=[(PAD, PAD)],
        dimension_numbers=("NCH", "OIH", "NCH"))


if __name__ == "__main__":
    key = jax.random.PRNGKey(0)
    B, L = 2, 128
    waveforms = jax.random.normal(key, (B, 1, L), dtype=jnp.float32)    # [B, 1, L]
    a_param = _make_a_param()                                           # [F, 1]

    out = jax.block_until_ready(cwconv_forward(waveforms, a_param))
    ref = _reference(waveforms, a_param)

    assert out.shape == (B, FILTER_N, L), out.shape
    assert jnp.allclose(out, ref, atol=1e-4, rtol=1e-4), \
        float(jnp.max(jnp.abs(out - ref)))

    print("KERNEL_OK")
</pallas_src>

<mosaic_0001>
module attributes {stable_mosaic.version = 11 : i64} {
  func.func @_cwconv_kernel(%arg0: i32, %arg1: memref<8x11xf32, #tpu.memory_space<vmem>>, %arg2: memref<1x1x128xf32, #tpu.memory_space<vmem>>, %arg3: memref<1x8x128xf32, #tpu.memory_space<vmem>>, %arg4: memref<1x138xf32, #tpu.memory_space<vmem>>) attributes {dimension_semantics = [#tpu.dimension_semantics<parallel>], iteration_bounds = array<i64: 2>, scalar_prefetch = 0 : i64, scratch_operands = 1 : i64, tpu.core_type = #tpu.core_type<tc>, window_params = [{pipeline_mode = #tpu.pipeline_mode<synchronous>, transform_indices = @transform_0, window_bounds = array<i64: 8, 11>}, {transform_indices = @transform_1, window_bounds = array<i64: 1, 1, 128>}, {transform_indices = @transform_2, window_bounds = array<i64: 1, 8, 128>}]} {
    %cst = arith.constant 0.000000e+00 : f32
    %0 = vector.broadcast %cst : f32 to vector<1x5xf32>
    %c0 = arith.constant 0 : index
    %c0_0 = arith.constant 0 : index
    %1 = vector.load %arg4[%c0, %c0_0] : memref<1x138xf32, #tpu.memory_space<vmem>>, vector<1x5xf32>
    tpu.vector_store %arg4[%c0, %c0_0], %0 {strides = array<i32>} : memref<1x138xf32, #tpu.memory_space<vmem>>, vector<1x5xf32>,
    %c0_1 = arith.constant 0 : index
    %c133 = arith.constant 133 : index
    %2 = vector.load %arg4[%c0_1, %c133] : memref<1x138xf32, #tpu.memory_space<vmem>>, vector<1x5xf32>
    tpu.vector_store %arg4[%c0_1, %c133], %0 {strides = array<i32>} : memref<1x138xf32, #tpu.memory_space<vmem>>, vector<1x5xf32>,
    %c0_2 = arith.constant 0 : index
    %c0_3 = arith.constant 0 : index
    %c0_4 = arith.constant 0 : index
    %3 = vector.load %arg2[%c0_2, %c0_3, %c0_4] : memref<1x1x128xf32, #tpu.memory_space<vmem>>, vector<1x1x128xf32>
    %4 = vector.shape_cast %3 : vector<1x1x128xf32> to vector<1x128xf32>
    %c0_5 = arith.constant 0 : index
    %c5 = arith.constant 5 : index
    %5 = vector.load %arg4[%c0_5, %c5] : memref<1x138xf32, #tpu.memory_space<vmem>>, vector<1x128xf32>
    tpu.vector_store %arg4[%c0_5, %c5], %4 {strides = array<i32>} : memref<1x138xf32, #tpu.memory_space<vmem>>, vector<1x128xf32>,
    %c0_6 = arith.constant 0 : index
    %c0_7 = arith.constant 0 : index
    %6 = vector.load %arg1[%c0_6, %c0_7] : memref<8x11xf32, #tpu.memory_space<vmem>>, vector<8x1xf32>
    %7 = vector.shape_cast %6 : vector<8x1xf32> to vector<8x1xf32>
    %8 = vector.broadcast %7 : vector<8x1xf32> to vector<8x128xf32>
    %c0_8 = arith.constant 0 : index
    %c1 = arith.constant 1 : index
    %9 = vector.load %arg1[%c0_8, %c1] : memref<8x11xf32, #tpu.memory_space<vmem>>, vector<8x1xf32>
    %10 = vector.shape_cast %9 : vector<8x1xf32> to vector<8x1xf32>
    %11 = vector.broadcast %10 : vector<8x1xf32> to vector<8x128xf32>
    %c0_9 = arith.constant 0 : index
    %c2 = arith.constant 2 : index
    %12 = vector.load %arg1[%c0_9, %c2] : memref<8x11xf32, #tpu.memory_space<vmem>>, vector<8x1xf32>
    %13 = vector.shape_cast %12 : vector<8x1xf32> to vector<8x1xf32>
    %14 = vector.broadcast %13 : vector<8x1xf32> to vector<8x128xf32>
    %c0_10 = arith.constant 0 : index
    %c3 = arith.constant 3 : index
    %15 = vector.load %arg1[%c0_10, %c3] : memref<8x11xf32, #tpu.memory_space<vmem>>, vector<8x1xf32>
    %16 = vector.shape_cast %15 : vector<8x1xf32> to vector<8x1xf32>
    %17 = vector.broadcast %16 : vector<8x1xf32> to vector<8x128xf32>
    %c0_11 = arith.constant 0 : index
    %c4 = arith.constant 4 : index
    %18 = vector.load %arg1[%c0_11, %c4] : memref<8x11xf32, #tpu.memory_space<vmem>>, vector<8x1xf32>
    %19 = vector.shape_cast %18 : vector<8x1xf32> to vector<8x1xf32>
    %20 = vector.broadcast %19 : vector<8x1xf32> to vector<8x128xf32>
    %c0_12 = arith.constant 0 : index
    %c5_13 = arith.constant 5 : index
    %21 = vector.load %arg1[%c0_12, %c5_13] : memref<8x11xf32, #tpu.memory_space<vmem>>, vector<8x1xf32>
    %22 = vector.shape_cast %21 : vector<8x1xf32> to vector<8x1xf32>
    %23 = vector.broadcast %22 : vector<8x1xf32> to vector<8x128xf32>
    %c0_14 = arith.constant 0 : index
    %c6 = arith.constant 6 : index
    %24 = vector.load %arg1[%c0_14, %c6] : memref<8x11xf32, #tpu.memory_space<vmem>>, vector<8x1xf32>
    %25 = vector.shape_cast %24 : vector<8x1xf32> to vector<8x1xf32>
    %26 = vector.broadcast %25 : vector<8x1xf32> to vector<8x128xf32>
    %c0_15 = arith.constant 0 : index
    %c7 = arith.constant 7 : index
    %27 = vector.load %arg1[%c0_15, %c7] : memref<8x11xf32, #tpu.memory_space<vmem>>, vector<8x1xf32>
    %28 = vector.shape_cast %27 : vector<8x1xf32> to vector<8x1xf32>
    %29 = vector.broadcast %28 : vector<8x1xf32> to vector<8x128xf32>
    %c0_16 = arith.constant 0 : index
    %c8 = arith.constant 8 : index
    %30 = vector.load %arg1[%c0_16, %c8] : memref<8x11xf32, #tpu.memory_space<vmem>>, vector<8x1xf32>
    %31 = vector.shape_cast %30 : vector<8x1xf32> to vector<8x1xf32>
    %32 = vector.broadcast %31 : vector<8x1xf32> to vector<8x128xf32>
    %c0_17 = arith.constant 0 : index
    %c9 = arith.constant 9 : index
    %33 = vector.load %arg1[%c0_17, %c9] : memref<8x11xf32, #tpu.memory_space<vmem>>, vector<8x1xf32>
    %34 = vector.shape_cast %33 : vector<8x1xf32> to vector<8x1xf32>
    %35 = vector.broadcast %34 : vector<8x1xf32> to vector<8x128xf32>
    %c0_18 = arith.constant 0 : index
    %c10 = arith.constant 10 : index
    %36 = vector.load %arg1[%c0_18, %c10] : memref<8x11xf32, #tpu.memory_space<vmem>>, vector<8x1xf32>
    %37 = vector.shape_cast %36 : vector<8x1xf32> to vector<8x1xf32>
    %38 = vector.broadcast %37 : vector<8x1xf32> to vector<8x128xf32>
    %c0_i32 = arith.constant 0 : i32
    %39 = arith.index_cast %c0_i32 : i32 to index
    %c0_19 = arith.constant 0 : index
    %40 = vector.load %arg4[%39, %c0_19] : memref<1x138xf32, #tpu.memory_space<vmem>>, vector<1x138xf32>
    %41 = vector.shape_cast %40 : vector<1x138xf32> to vector<1x138xf32>
    %42 = vector.broadcast %41 : vector<1x138xf32> to vector<8x138xf32>
    %43 = vector.extract_strided_slice %42 {offsets = [0, 0], sizes = [8, 128], strides = [1, 1]} : vector<8x138xf32> to vector<8x128xf32>
    %44 = arith.mulf %8, %43 : vector<8x128xf32>
    %45 = vector.extract_strided_slice %42 {offsets = [0, 1], sizes = [8, 128], strides = [1, 1]} : vector<8x138xf32> to vector<8x128xf32>
    %46 = arith.mulf %11, %45 : vector<8x128xf32>
    %47 = arith.addf %44, %46 : vector<8x128xf32>
    %48 = vector.extract_strided_slice %42 {offsets = [0, 2], sizes = [8, 128], strides = [1, 1]} : vector<8x138xf32> to vector<8x128xf32>
    %49 = arith.mulf %14, %48 : vector<8x128xf32>
    %50 = arith.addf %47, %49 : vector<8x128xf32>
    %51 = vector.extract_strided_slice %42 {offsets = [0, 3], sizes = [8, 128], strides = [1, 1]} : vector<8x138xf32> to vector<8x128xf32>
    %52 = arith.mulf %17, %51 : vector<8x128xf32>
    %53 = arith.addf %50, %52 : vector<8x128xf32>
    %54 = vector.extract_strided_slice %42 {offsets = [0, 4], sizes = [8, 128], strides = [1, 1]} : vector<8x138xf32> to vector<8x128xf32>
    %55 = arith.mulf %20, %54 : vector<8x128xf32>
    %56 = arith.addf %53, %55 : vector<8x128xf32>
    %57 = vector.extract_strided_slice %42 {offsets = [0, 5], sizes = [8, 128], strides = [1, 1]} : vector<8x138xf32> to vector<8x128xf32>
    %58 = arith.mulf %23, %57 : vector<8x128xf32>
    %59 = arith.addf %56, %58 : vector<8x128xf32>
    %60 = vector.extract_strided_slice %42 {offsets = [0, 6], sizes = [8, 128], strides = [1, 1]} : vector<8x138xf32> to vector<8x128xf32>
    %61 = arith.mulf %26, %60 : vector<8x128xf32>
    %62 = arith.addf %59, %61 : vector<8x128xf32>
    %63 = vector.extract_strided_slice %42 {offsets = [0, 7], sizes = [8, 128], strides = [1, 1]} : vector<8x138xf32> to vector<8x128xf32>
    %64 = arith.mulf %29, %63 : vector<8x128xf32>
    %65 = arith.addf %62, %64 : vector<8x128xf32>
    %66 = vector.extract_strided_slice %42 {offsets = [0, 8], sizes = [8, 128], strides = [1, 1]} : vector<8x138xf32> to vector<8x128xf32>
    %67 = arith.mulf %32, %66 : vector<8x128xf32>
    %68 = arith.addf %65, %67 : vector<8x128xf32>
    %69 = vector.extract_strided_slice %42 {offsets = [0, 9], sizes = [8, 128], strides = [1, 1]} : vector<8x138xf32> to vector<8x128xf32>
    %70 = arith.mulf %35, %69 : vector<8x128xf32>
    %71 = arith.addf %68, %70 : vector<8x128xf32>
    %72 = vector.extract_strided_slice %42 {offsets = [0, 10], sizes = [8, 128], strides = [1, 1]} : vector<8x138xf32> to vector<8x128xf32>
    %73 = arith.mulf %38, %72 : vector<8x128xf32>
    %74 = arith.addf %71, %73 : vector<8x128xf32>
    %75 = arith.index_cast %c0_i32 : i32 to index
    %c0_20 = arith.constant 0 : index
    %c0_21 = arith.constant 0 : index
    %76 = vector.load %arg3[%75, %c0_20, %c0_21] : memref<1x8x128xf32, #tpu.memory_space<vmem>>, vector<1x8x128xf32>
    %77 = vector.shape_cast %76 : vector<1x8x128xf32> to vector<8x128xf32>
    %78 = vector.shape_cast %74 : vector<8x128xf32> to vector<1x8x128xf32>
    tpu.vector_store %arg3[%75, %c0_20, %c0_21], %78 {strides = array<i32>} : memref<1x8x128xf32, #tpu.memory_space<vmem>>, vector<1x8x128xf32>,
    %c1_i32 = arith.constant 1 : i32
    return
  }
  func.func @transform_0(%arg0: i32) -> (i32, i32) {
    %c0_i32 = arith.constant 0 : i32
    %c0_i32_0 = arith.constant 0 : i32
    %c0_i32_1 = arith.constant 0 : i32
    return %c0_i32, %c0_i32_0 : i32, i32
  }
  func.func @transform_1(%arg0: i32) -> (i32, i32, i32) {
    %c0_i32 = arith.constant 0 : i32
    %c0_i32_0 = arith.constant 0 : i32
    %c0_i32_1 = arith.constant 0 : i32
    return %arg0, %c0_i32, %c0_i32_0 : i32, i32, i32
  }
  func.func @transform_2(%arg0: i32) -> (i32, i32, i32) {
    %c0_i32 = arith.constant 0 : i32
    %c0_i32_0 = arith.constant 0 : i32
    %c0_i32_1 = arith.constant 0 : i32
    return %arg0, %c0_i32, %c0_i32_0 : i32, i32, i32
  }
}

</mosaic_0001>

<llo_original>
// kernel: tpu_custom_call.1
$region0: #{tpu_custom_call.1}
  #allocation0 [shape = 'u32[]', space=smem, size = 0x4, offset = 0x4, fixed_abs, tag = 'smem constant byte address 0x4 - core index']
  #allocation1 [shape = 'u32[72,128]{1,0:T(1,128)}', space=vmem, size = 0x9000, scoped, tag = 'internal scratch']
  #allocation2 [shape = 'f32[1,138]{1,0:T(1,128)}', space=vmem, size = 0x400, scoped, tag = 'scratch operand']
  %s0 = inlined_call_operand.hbm [shape: f32[8,11], index: 0, kind: input, shape index: {}]
  %s1 = inlined_call_operand.hbm [shape: f32[2,1,128], index: 1, kind: input, shape index: {}]
  %s2 = inlined_call_operand.hbm [shape: f32[2,8,128], index: 2, kind: output, shape index: {}]
  %s3 = sld [smem:[#allocation0]]
  $region49: #{tpu_custom_call.1} parent=0
    _
  %s5 = ssub.s32 1, %s3
  %s6 = scalar_select 0, %s5, %s3
  $region1: #{tpu_custom_call.1} parent=0
    #allocation3 [shape = 'u8[4096]{0}', space=vmem, size = 0x1000, scoped, tag = 'input window, operand 0, single buffered']
    #allocation4 [shape = 's32[2]{0}', space=sflag, size = 0x8, scoped, tag = 'scoped memory for tpu_custom_call.1']
    #allocation5 [shape = 's32[2]{0}', space=sflag, size = 0x8, scoped, tag = 'scoped memory for tpu_custom_call.1']
    #allocation6 [shape = 'u8[1024]{0}', space=vmem, size = 0x400, scoped, tag = 'input window, operand 1']
    #allocation7 [shape = 's32[2]{0}', space=sflag, size = 0x8, scoped, tag = 'scoped memory for tpu_custom_call.1']
    #allocation8 [shape = 'u8[8192]{0}', space=vmem, size = 0x2000, scoped, tag = 'output window, operand 0']
    %7 = vsyncpa [#allocation4], 0
    %8 = vsyncpa [#allocation7], 0
    %s9 = scalar_lea.sflag [#allocation7], 1
    %10 = vsyncpa %s9, 0
    %11 = vsyncpa [#allocation5], 0
    %s12 = scalar_lea.sflag [#allocation5], 1
    %13 = vsyncpa %s12, 0
    loop: start=0, step=1, limit=4
    $region2: #{tpu_custom_call.1} parent=1 // loop_pre_header
      _
    $region3: #{tpu_custom_call.1} parent=1 // loop_header
      %s15 = sphi 0, %s19
      %p16 = scmp.ge.s32.totalorder %s15, 4
      %s23 = sphi 0, %s23
      %s25 = sphi 0, %s23
      %s26 = sphi 0, %s25
      %s40 = sphi 0, %s26
      %s46 = sphi 0, %s48
      %s49 = sphi 0, %s46
      %s50 = sphi 0, %s49
      %s66 = sphi 0, %s50
      %s72 = sphi 0, %s74
      %s75 = sphi 0, %s72
      %s76 = sphi 0, %s75
      %s92 = sphi 0, %s76
    $region4: #{tpu_custom_call.1} parent=1 // loop_header_branch
      %18 = sbr.rel (%p16) target = $region8
    $region5: #{tpu_custom_call.1} parent=1 // loop_body
      %s20 = ssub.s32 %s15, 1
      %s21 = ssub.s32 %s15, 2
      %s22 = sadd.s32 %s15, 1
      %s24 = sadd.s32 %s23, 1
      %p27 = scmp.eq.s32.totalorder %s15, 1
      %p28 = scmp.ne.s32.totalorder %s23, %s25
      %p29 = scmp.eq.s32.totalorder %s15, 0
      %p30 = por %p28, %p29
      %p31 = scmp.ne.s32.totalorder %s23, %s25
      %p32 = scmp.eq.s32.totalorder %s20, 1
      %p33 = por %p31, %p32
      %p34 = scmp.ne.s32.totalorder %s25, %s26
      %p35 = scmp.eq.s32.totalorder %s20, 0
      %p36 = por %p34, %p35
      %p37 = scmp.ne.s32.totalorder %s25, %s26
      %p38 = scmp.eq.s32.totalorder %s21, 1
      %p39 = por %p37, %p38
      %p41 = scmp.ne.s32.totalorder %s26, %s40
      %p42 = scmp.eq.s32.totalorder %s21, 0
      %p43 = por %p41, %p42
      %s44 = ssub.s32 %s15, %s22
      %p45 = scmp.eq.s32.totalorder %s44, 0
      %s47 = sadd.s32 %s46, 1
      %s48 = scalar_select %p45, %s46, %s47
      %p51 = pneg %p45
      %p52 = scmp.eq.s32.totalorder %s15, 1
      %p53 = por %p51, %p52
      %p54 = scmp.ne.s32.totalorder %s46, %s49
      %p55 = scmp.eq.s32.totalorder %s15, 0
      %p56 = por %p54, %p55
      %p57 = scmp.ne.s32.totalorder %s46, %s49
      %p58 = scmp.eq.s32.totalorder %s20, 1
      %p59 = por %p57, %p58
      %p60 = scmp.ne.s32.totalorder %s49, %s50
      %p61 = scmp.eq.s32.totalorder %s20, 0
      %p62 = por %p60, %p61
      %p63 = scmp.ne.s32.totalorder %s49, %s50
      %p64 = scmp.eq.s32.totalorder %s21, 1
      %p65 = por %p63, %p64
      %p67 = scmp.ne.s32.totalorder %s50, %s66
      %p68 = scmp.eq.s32.totalorder %s21, 0
      %p69 = por %p67, %p68
      %s70 = ssub.s32 %s15, %s22
      %p71 = scmp.eq.s32.totalorder %s70, 0
      %s73 = sadd.s32 %s72, 1
      %s74 = scalar_select %p71, %s72, %s73
      %p77 = pneg %p71
      %p78 = scmp.eq.s32.totalorder %s15, 1
      %p79 = por %p77, %p78
      %p80 = scmp.ne.s32.totalorder %s72, %s75
      %p81 = scmp.eq.s32.totalorder %s15, 0
      %p82 = por %p80, %p81
      %p83 = scmp.ne.s32.totalorder %s72, %s75
      %p84 = scmp.eq.s32.totalorder %s20, 1
      %p85 = por %p83, %p84
      %p86 = scmp.ne.s32.totalorder %s75, %s76
      %p87 = scmp.eq.s32.totalorder %s20, 0
      %p88 = por %p86, %p87
      %p89 = scmp.ne.s32.totalorder %s75, %s76
      %p90 = scmp.eq.s32.totalorder %s21, 1
      %p91 = por %p89, %p90
      %p93 = scmp.ne.s32.totalorder %s76, %s92
      %p94 = scmp.eq.s32.totalorder %s21, 0
      %p95 = por %p93, %p94
      %p96 = scmp.le.s32.totalorder 1, %s15
      %p97 = scmp.lt.s32.totalorder %s15, 3
      %p98 = pnand %p96, %p97
      %p99 = pneg %p98
      // Predicated region
      $region9: #{tpu_custom_call.1} parent=5 // pred_check
        _
      $region10: #{tpu_custom_call.1} parent=5 // pred_check_branch
        %101 = sbr.rel (%p98) target = $region12
      $region11: #{tpu_custom_call.1} parent=5 // pred_region
        %s102 = ssub.s32 %s15, 1
        // Predicated region
        $region13: #{tpu_custom_call.1} parent=11 // pred_check
          %p103 = pneg %p36
        $region14: #{tpu_custom_call.1} parent=11 // pred_check_branch
          %105 = sbr.rel (%p103) target = $region16
        $region15: #{tpu_custom_call.1} parent=11 // pred_region
          %107 = vsyncadd [#allocation4], 0
          %s109 = sshll.u32 %s0, 4
          %s110 = int_to_ptr.hbm [resolvable:$true] %s109
          %s111 = sshll.u32 [#allocation3], 4
          %s112 = int_to_ptr.vmem [resolvable:$true] %s111
          %114 = dma.hbm_to_vmem [thread:$0]  %s110, 128, %s112, [#allocation4]
        $region16: #{tpu_custom_call.1} parent=11 // pred_fallthru
          _
      $region12: #{tpu_custom_call.1} parent=5 // pred_fallthru
        _
      %p115 = scmp.lt.s32.totalorder %s15, 2
      // Predicated region
      $region17: #{tpu_custom_call.1} parent=5 // pred_check
        %p116 = pneg %p115
      $region18: #{tpu_custom_call.1} parent=5 // pred_check_branch
        %118 = sbr.rel (%p116) target = $region20
      $region19: #{tpu_custom_call.1} parent=5 // pred_region
        // Predicated region
        $region21: #{tpu_custom_call.1} parent=19 // pred_check
          %p119 = pneg %p56
        $region22: #{tpu_custom_call.1} parent=19 // pred_check_branch
          %121 = sbr.rel (%p119) target = $region24
        $region23: #{tpu_custom_call.1} parent=19 // pred_region
          %s122 = sand.u32 %s46, 1
          %s123 = scalar_lea.sflag [#allocation7], %s122
          %s124 = sand.u32 %s46, 1
          %s125 = scalar_lea.vmem [#allocation6], %s124
          %127 = vsyncadd %s123, 0
          %s128 = scalar_lea.hbm %s1, %s15
          %s130 = sshll.u32 %s128, 4
          %s131 = int_to_ptr.hbm [resolvable:$true] %s130
          %s132 = sshll.u32 %s125, 4
          %s133 = int_to_ptr.vmem [resolvable:$true] %s132
          %135 = dma.hbm_to_vmem [thread:$0]  %s131, 16, %s133, %s123
        $region24: #{tpu_custom_call.1} parent=19 // pred_fallthru
          _
      $region20: #{tpu_custom_call.1} parent=5 // pred_fallthru
        _
      %p136 = scmp.le.s32.totalorder 1, %s15
      %p137 = scmp.lt.s32.totalorder %s15, 3
      %p138 = pnand %p136, %p137
      %p139 = pneg %p138
      // Predicated region
      $region25: #{tpu_custom_call.1} parent=5 // pred_check
        _
      $region26: #{tpu_custom_call.1} parent=5 // pred_check_branch
        %141 = sbr.rel (%p138) target = $region28
      $region27: #{tpu_custom_call.1} parent=5 // pred_region
        %s142 = ssub.s32 %s15, 1
        // Predicated region
        $region29: #{tpu_custom_call.1} parent=27 // pred_check
          %p143 = pneg %p36
        $region30: #{tpu_custom_call.1} parent=27 // pred_check_branch
          %145 = sbr.rel (%p143) target = $region32
        $region31: #{tpu_custom_call.1} parent=27 // pred_region
          %147 = dma.done [#allocation4], 128
        $region32: #{tpu_custom_call.1} parent=27 // pred_fallthru
          _
        %s148 = sand.u32 %s49, 1
        %s149 = scalar_lea.sflag [#allocation7], %s148
        %s150 = sand.u32 %s49, 1
        %s151 = scalar_lea.vmem [#allocation6], %s150
        // Predicated region
        $region33: #{tpu_custom_call.1} parent=27 // pred_check
          %p152 = pneg %p62
        $region34: #{tpu_custom_call.1} parent=27 // pred_check_branch
          %154 = sbr.rel (%p152) target = $region36
        $region35: #{tpu_custom_call.1} parent=27 // pred_region
          %156 = dma.done %s149, 16
        $region36: #{tpu_custom_call.1} parent=27 // pred_fallthru
          _
        %p157 = pneg %p36
        %p158 = pneg %p33
        %s159 = sand.u32 %s49, 1
        %s160 = scalar_lea.sflag [#allocation7], %s159
        %s161 = sand.u32 %s49, 1
        %s162 = scalar_lea.vmem [#allocation6], %s161
        %p163 = pneg %p62
        %p164 = pneg %p59
        %p165 = pneg %p88
        %p166 = pneg %p85
        %s167 = sand.u32 %s75, 1
        %s168 = scalar_lea.sflag [#allocation5], %s167
        %s169 = sand.u32 %s75, 1
        %s170 = smul.addr %s169, 8
        %s171 = scalar_lea.vmem [#allocation8], %s170
        %v172 = vlaneseq
        %vm173 = vcmp.ge.s32.totalorder %v172, 0
        %vm174 = vcmp.lt.s32.totalorder %v172, 5
        %vm175 = vmand %vm173, %vm174
        %176 = vst.msk [vmem:[#allocation2] sm:$0x1] %vm175, 0.0
        %vm177 = vcmp.ge.s32.totalorder %v172, 5
        %vm178 = vcmp.lt.s32.totalorder %v172, 10
        %vm179 = vmand %vm177, %vm178
        %180 = vst.msk [vmem:[#allocation2 + $0x1] sm:$0x1] %vm179, 0.0
        %v181 = vld [vmem:[%s151] sm:$0x1]
        %183 = vrot.lane.b32.xlu0 %v181, 5
        %v184 = vpop.permute.xlu0 %183
        %v185 = vrot.slane %v184, 7
        %vm186 = vcmask 39936
        %v187 = vsel %vm186, %v185, %v184
        %vm189 = vcmp.lt.s32.totalorder %v172, 133
        %vm190 = vmand %vm177, %vm189
        %191 = vst.msk [vmem:[#allocation2] sm:$0x3] %vm190, %v187
        %v192 = vld [vmem:[#allocation3] sm:$0xff]
        %194 = vset.pattern.permute.xlu0 0
        %195 = vperm.xlu0 %194, %v192
        %v196 = vpop.permute.xlu0 %195
        %198 = vset.pattern.permute.xlu0 1
        %199 = vperm.xlu0 %198, %v192
        %v200 = vpop.permute.xlu0 %199
        %202 = vset.pattern.permute.xlu0 2
        %203 = vperm.xlu0 %202, %v192
        %v204 = vpop.permute.xlu0 %203
        %206 = vset.pattern.permute.xlu0 3
        %207 = vperm.xlu0 %206, %v192
        %v208 = vpop.permute.xlu0 %207
        %210 = vset.pattern.permute.xlu0 4
        %211 = vperm.xlu0 %210, %v192
        %v212 = vpop.permute.xlu0 %211
        %214 = vset.pattern.permute.xlu0 5
        %215 = vperm.xlu0 %214, %v192
        %v216 = vpop.permute.xlu0 %215
        %218 = vset.pattern.permute.xlu0 6
        %219 = vperm.xlu0 %218, %v192
        %v220 = vpop.permute.xlu0 %219
        %222 = vset.pattern.permute.xlu0 7
        %223 = vperm.xlu0 %222, %v192
        %v224 = vpop.permute.xlu0 %223
        %226 = vset.pattern.permute.xlu0 8
        %227 = vperm.xlu0 %226, %v192
        %v228 = vpop.permute.xlu0 %227
        %230 = vset.pattern.permute.xlu0 9
        %231 = vperm.xlu0 %230, %v192
        %v232 = vpop.permute.xlu0 %231
        %234 = vset.pattern.permute.xlu0 10
        %235 = vperm.xlu0 %234, %v192
        %v236 = vpop.permute.xlu0 %235
        %v238 = vld [vmem:[#allocation2] sm:$0x3]
        %v240 = vperm.slane %v238, 0
        %v242 = vmul.f32 %v196, %v240
        %v243 = vperm.slane %v238, 1
        %v245 = vmul.f32 %v200, %v240
        %v246 = vmul.f32 %v200, %v243
        %249 = vrot.lane.b32.xlu0 %v245, 127
        %v250 = vpop.permute.xlu0 %249
        %251 = vrot.lane.b32.xlu0 %v246, 127
        %v252 = vpop.permute.xlu0 %251
        %vm253 = vcmask 1039360
        %v254 = vsel %vm253, %v250, %v252
        %v256 = vadd.f32 %v242, %v254
        %v257 = vmul.f32 %v204, %v240
        %v258 = vmul.f32 %v204, %v243
        %261 = vrot.lane.b32.xlu0 %v257, 126
        %v262 = vpop.permute.xlu0 %261
        %263 = vrot.lane.b32.xlu0 %v258, 126
        %v264 = vpop.permute.xlu0 %263
        %vm265 = vcmask 1031168
        %v266 = vsel %vm265, %v262, %v264
        %v268 = vadd.f32 %v256, %v266
        %v269 = vmul.f32 %v208, %v240
        %v270 = vmul.f32 %v208, %v243
        %273 = vrot.lane.b32.xlu0 %v269, 125
        %v274 = vpop.permute.xlu0 %273
        %275 = vrot.lane.b32.xlu0 %v270, 125
        %v276 = vpop.permute.xlu0 %275
        %vm277 = vcmask 1022976
        %v278 = vsel %vm277, %v274, %v276
        %v280 = vadd.f32 %v268, %v278
        %v281 = vmul.f32 %v212, %v240
        %v282 = vmul.f32 %v212, %v243
        %285 = vrot.lane.b32.xlu0 %v281, 124
        %v286 = vpop.permute.xlu0 %285
        %287 = vrot.lane.b32.xlu0 %v282, 124
        %v288 = vpop.permute.xlu0 %287
        %vm289 = vcmask 1014784
        %v290 = vsel %vm289, %v286, %v288
        %v292 = vadd.f32 %v280, %v290
        %v293 = vmul.f32 %v216, %v240
        %v294 = vmul.f32 %v216, %v243
        %297 = vrot.lane.b32.xlu0 %v293, 123
        %v298 = vpop.permute.xlu0 %297
        %299 = vrot.lane.b32.xlu0 %v294, 123
        %v300 = vpop.permute.xlu0 %299
        %vm301 = vcmask 1006592
        %v302 = vsel %vm301, %v298, %v300
        %v304 = vadd.f32 %v292, %v302
        %v305 = vmul.f32 %v220, %v240
        %v306 = vmul.f32 %v220, %v243
        %309 = vrot.lane.b32.xlu0 %v305, 122
        %v310 = vpop.permute.xlu0 %309
        %311 = vrot.lane.b32.xlu0 %v306, 122
        %v312 = vpop.permute.xlu0 %311
        %vm313 = vcmask 998400
        %v314 = vsel %vm313, %v310, %v312
        %v316 = vadd.f32 %v304, %v314
        %v317 = vmul.f32 %v224, %v240
        %v318 = vmul.f32 %v224, %v243
        %321 = vrot.lane.b32.xlu0 %v317, 121
        %v322 = vpop.permute.xlu0 %321
        %323 = vrot.lane.b32.xlu0 %v318, 121
        %v324 = vpop.permute.xlu0 %323
        %vm325 = vcmask 990208
        %v326 = vsel %vm325, %v322, %v324
        %v328 = vadd.f32 %v316, %v326
        %v329 = vmul.f32 %v228, %v240
        %v330 = vmul.f32 %v228, %v243
        %333 = vrot.lane.b32.xlu0 %v329, 120
        %v334 = vpop.permute.xlu0 %333
        %335 = vrot.lane.b32.xlu0 %v330, 120
        %v336 = vpop.permute.xlu0 %335
        %vm337 = vcmask 982016
        %v338 = vsel %vm337, %v334, %v336
        %v340 = vadd.f32 %v328, %v338
        %v341 = vmul.f32 %v232, %v240
        %v342 = vmul.f32 %v232, %v243
        %345 = vrot.lane.b32.xlu0 %v341, 119
        %v346 = vpop.permute.xlu0 %345
        %347 = vrot.lane.b32.xlu0 %v342, 119
        %v348 = vpop.permute.xlu0 %347
        %vm349 = vcmask 973824
        %v350 = vsel %vm349, %v346, %v348
        %v352 = vadd.f32 %v340, %v350
        %v353 = vmul.f32 %v236, %v240
        %v354 = vmul.f32 %v236, %v243
        %357 = vrot.lane.b32.xlu0 %v353, 118
        %v358 = vpop.permute.xlu0 %357
        %359 = vrot.lane.b32.xlu0 %v354, 118
        %v360 = vpop.permute.xlu0 %359
        %vm361 = vcmask 965632
        %v362 = vsel %vm361, %v358, %v360
        %v364 = vadd.f32 %v352, %v362
        %365 = vst [vmem:[%s171] sm:$0xff] %v364
        %s366 = sand.u32 %s75, 1
        %s367 = scalar_lea.sflag [#allocation5], %s366
        %s368 = sand.u32 %s75, 1
        %s369 = smul.addr %s368, 8
        %s370 = scalar_lea.vmem [#allocation8], %s369
        // Predicated region
        $region37: #{tpu_custom_call.1} parent=27 // pred_check
          %p371 = pneg %p85
        $region38: #{tpu_custom_call.1} parent=27 // pred_check_branch
          %373 = sbr.rel (%p371) target = $region40
        $region39: #{tpu_custom_call.1} parent=27 // pred_region
          %375 = vsyncadd %s367, 0
          %s376 = smul.addr %s20, 8
          %s377 = scalar_lea.hbm %s2, %s376
          %s379 = sshll.u32 %s370, 4
          %s380 = int_to_ptr.vmem [resolvable:$true] %s379
          %s381 = sshll.u32 %s377, 4
          %s382 = int_to_ptr.hbm [resolvable:$true] %s381
          %384 = dma.vmem_to_hbm [thread:$0]  %s380, 128, %s382, %s367
        $region40: #{tpu_custom_call.1} parent=27 // pred_fallthru
          _
      $region28: #{tpu_custom_call.1} parent=5 // pred_fallthru
        _
      %p385 = scmp.le.s32.totalorder 2, %s15
      // Predicated region
      $region41: #{tpu_custom_call.1} parent=5 // pred_check
        %p386 = pneg %p385
      $region42: #{tpu_custom_call.1} parent=5 // pred_check_branch
        %388 = sbr.rel (%p386) target = $region44
      $region43: #{tpu_custom_call.1} parent=5 // pred_region
        %s389 = ssub.s32 %s15, 2
        // Predicated region
        $region45: #{tpu_custom_call.1} parent=43 // pred_check
          %p390 = pneg %p91
        $region46: #{tpu_custom_call.1} parent=43 // pred_check_branch
          %392 = sbr.rel (%p390) target = $region48
        $region47: #{tpu_custom_call.1} parent=43 // pred_region
          %s393 = sand.u32 %s76, 1
          %s394 = scalar_lea.sflag [#allocation5], %s393
          %s395 = sand.u32 %s76, 1
          %s396 = smul.addr %s395, 8
          %s397 = scalar_lea.vmem [#allocation8], %s396
          %399 = dma.done %s394, 128
        $region48: #{tpu_custom_call.1} parent=43 // pred_fallthru
          _
      $region44: #{tpu_custom_call.1} parent=5 // pred_fallthru
        _
    $region6: #{tpu_custom_call.1} parent=1 // loop_footer
      %s19 = sadd.s32 1, %s15
    $region7: #{tpu_custom_call.1} parent=1 // loop_footer_branch
      %14 = sbr.rel target = $region3
    $region8: #{tpu_custom_call.1} parent=1 // loop_exit
      _
    %400 = vsyncpa [#allocation4], 1
    %s401 = scalar_lea.sflag [#allocation4], 1
    %402 = vsyncpa %s401, 1
    %403 = vsyncpa [#allocation7], 1
    %s404 = scalar_lea.sflag [#allocation7], 1
    %405 = vsyncpa %s404, 1
    %406 = vsyncpa [#allocation5], 1
    %s407 = scalar_lea.sflag [#allocation5], 1
    %408 = vsyncpa %s407, 1

</llo_original>
